<compile_context>
chip_gen: v7x
topology: tpu7x:2x2x1
jax: 0.10.0
libtpu: 0.0.40
codegen_flags: <defaults>
</compile_context>

<pallas_src>
import numpy as np
import jax
import jax.numpy as jnp
from jax import lax
from jax.experimental import pallas as pl
from jax.experimental.pallas import tpu as pltpu


def _render_kernel(phw_ref, filt_ref, out_ref):
    """Single invocation: loop over all parts, accumulate into the padded canvas."""
    out_ref[...] = jnp.zeros_like(out_ref)          # unconditional init (handles N==0 too)

    n = phw_ref.shape[0] // 3                       # static trip count
    num_parts, fh, fw = filt_ref.shape
    HP, WPp = out_ref.shape

    # Loop-invariant lane-index difference for the one-hot column-shift matrix:
    # B[b, c] = 1.0  iff  c == b + col   <=>   (c - b) == col
    b_idx = lax.broadcasted_iota(jnp.int32, (fw, WPp), 0)
    c_idx = lax.broadcasted_iota(jnp.int32, (fw, WPp), 1)
    c_minus_b = c_idx - b_idx

    def body(i, carry):
        part = phw_ref[3 * i]
        row = phw_ref[3 * i + 1]
        col = phw_ref[3 * i + 2]

        filt = filt_ref[part]                       # (fh, fw), dynamic plane select
        B = (c_minus_b == col).astype(jnp.float32)  # (fw, WPp) one-hot column shift
        shifted = jnp.dot(filt.astype(jnp.float32), B,
                          preferred_element_type=jnp.float32)   # (fh, WPp)

        # Row (sublane) shift via dynamic slice; clamp so stores can never go OOB.
        row_c = jnp.clip(row, 0, HP - fh)
        cur = out_ref[pl.ds(row_c, fh), :]
        out_ref[pl.ds(row_c, fh), :] = cur + shifted
        return carry

    lax.fori_loop(0, n, body, 0)


def rendering_model_forward(filters, phw_list, image_shape):
    """
    Pallas equivalent of RenderingModel.forward.

    filters:   (num_parts, filt_h, filt_w) float32
    phw_list:  (N, 3) int32 -- columns (part_idx, row, col); rows/cols assumed in-canvas
    returns:   (H, W) float32 canvas
    """
    H, W = image_shape
    num_parts, fh, fw = filters.shape
    oh, ow = fh // 2, fw // 2
    N = int(phw_list.shape[0])

    if N == 0:
        return jnp.zeros((H, W), jnp.float32)

    # Padded canvas: +filt on each axis (so in-canvas placements never clip), then round
    # height up to a multiple of 8 sublanes and width up to a multiple of 128 lanes.
    HP_pad = ((H + fh + 7) // 8) * 8
    WP_pad = ((W + fw + 127) // 128) * 128

    phw_flat = jnp.asarray(phw_list, jnp.int32).reshape(-1)     # (3*N,), SMEM-friendly 1-D

    flops = 2 * N * fh * fw * WP_pad + N * fh * WP_pad
    bytes_accessed = 4 * (HP_pad * WP_pad + num_parts * fh * fw + 3 * N)

    # TODO(synk): for very large N on v7x, split parts across the two TensorCores
    # (core-parallel leading axis, per-core canvases summed afterwards) for ~2x.
    padded = pl.pallas_call(
        _render_kernel,
        out_shape=jax.ShapeDtypeStruct((HP_pad, WP_pad), jnp.float32),
        grid_spec=pltpu.PrefetchScalarGridSpec(
            num_scalar_prefetch=1,
            grid=(1,),
            in_specs=[
                # Whole filter bank resident in VMEM (tiny: num_parts*fh*fw*4 bytes).
                pl.BlockSpec((num_parts, fh, fw), lambda i, phw: (0, 0, 0)),
            ],
            out_specs=pl.BlockSpec((HP_pad, WP_pad), lambda i, phw: (0, 0)),
        ),
        compiler_params=pltpu.CompilerParams(
            dimension_semantics=("arbitrary",),
        ),
        cost_estimate=pl.CostEstimate(
            flops=int(flops), transcendentals=0, bytes_accessed=int(bytes_accessed)
        ),
    )(phw_flat, filters.astype(jnp.float32))

    # Static crop implements the border clipping of the reference (plain-JAX glue).
    return padded[oh:oh + H, ow:ow + W]


def _reference_numpy(filters_np, phw_np, image_shape):
    """Direct numpy port of the PyTorch forward (with explicit clipping)."""
    H, W = image_shape
    _, fh, fw = filters_np.shape
    oh, ow = fh // 2, fw // 2
    canvas = np.zeros((H, W), dtype=np.float32)
    for p, r, c in phw_np:
        r0, r1 = max(0, r - oh), min(H, r - oh + fh)
        c0, c1 = max(0, c - ow), min(W, c - ow + fw)
        fr0, fr1 = max(0, oh - r), min(fh, H - r + oh)
        fc0, fc1 = max(0, ow - c), min(fw, W - c + ow)
        canvas[r0:r1, c0:c1] += filters_np[p, fr0:fr1, fc0:fc1]
    return canvas


if __name__ == "__main__":
    # Small, deterministic setup consistent with the module's __init__ shapes.
    num_parts = 4
    filter_size = (8, 8)
    image_shape = (32, 32)
    n_parts_in_image = 6

    key = jax.random.PRNGKey(0)
    k_f, k_p, k_r, k_c = jax.random.split(key, 4)

    # Parameter init (deterministic stand-in for nn.Parameter(torch.randn(...))).
    filters = jax.random.normal(
        k_f, (num_parts, filter_size[0], filter_size[1]), dtype=jnp.float32
    )

    part_idx = jax.random.randint(k_p, (n_parts_in_image,), 0, num_parts)
    rows = jax.random.randint(k_r, (n_parts_in_image,), 0, image_shape[0])
    cols = jax.random.randint(k_c, (n_parts_in_image,), 0, image_shape[1])
    phw_list = jnp.stack([part_idx, rows, cols], axis=1).astype(jnp.int32)

    canvas = rendering_model_forward(filters, phw_list, image_shape)
    canvas = jax.block_until_ready(canvas)

    ref = _reference_numpy(np.asarray(filters), np.asarray(phw_list), image_shape)
    np.testing.assert_allclose(np.asarray(canvas), ref, rtol=1e-5, atol=1e-5)

    print("KERNEL_OK")
</pallas_src>

<mosaic_0001>
module attributes {stable_mosaic.version = 11 : i64} {
  func.func @_render_kernel(%arg0: i32, %arg1: memref<18xi32, #tpu.memory_space<smem>>, %arg2: memref<4x8x8xf32, #tpu.memory_space<vmem>>, %arg3: memref<40x128xf32, #tpu.memory_space<vmem>>) attributes {dimension_semantics = [#tpu.dimension_semantics<arbitrary>], iteration_bounds = array<i64: 1>, scalar_prefetch = 1 : i64, scratch_operands = 0 : i64, tpu.core_type = #tpu.core_type<tc>, window_params = [{pipeline_mode = #tpu.pipeline_mode<synchronous>, transform_indices = @transform_0, window_bounds = array<i64: 4, 8, 8>}, {pipeline_mode = #tpu.pipeline_mode<synchronous>, transform_indices = @transform_1, window_bounds = array<i64: 40, 128>}]} {
    %cst = arith.constant 0.000000e+00 : f32
    %0 = vector.broadcast %cst : f32 to vector<40x128xf32>
    %c0 = arith.constant 0 : index
    %c0_0 = arith.constant 0 : index
    %1 = vector.load %arg3[%c0, %c0_0] : memref<40x128xf32, #tpu.memory_space<vmem>>, vector<40x128xf32>
    tpu.vector_store %arg3[%c0, %c0_0], %0 {strides = array<i32>} : memref<40x128xf32, #tpu.memory_space<vmem>>, vector<40x128xf32>,
    %2 = tpu.iota {dimensions = array<i32: 0>} : vector<8x128xi32>
    %3 = tpu.iota {dimensions = array<i32: 1>} : vector<8x128xi32>
    %4 = arith.subi %3, %2 : vector<8x128xi32>
    %c0_i32 = arith.constant 0 : i32
    %c6_i32 = arith.constant 6 : i32
    %5 = arith.addi %c0_i32, %c6_i32 : i32
    %c1_i32 = arith.constant 1 : i32
    scf.for %arg4 = %c0_i32 to %5 step %c1_i32  : i32 {
      %c3_i32 = arith.constant 3 : i32
      %6 = arith.muli %c3_i32, %arg4 : i32
      %7 = arith.index_cast %6 : i32 to index
      %8 = memref.load %arg1[%7] : memref<18xi32, #tpu.memory_space<smem>>
      %c3_i32_2 = arith.constant 3 : i32
      %9 = arith.muli %c3_i32_2, %arg4 : i32
      %c1_i32_3 = arith.constant 1 : i32
      %10 = arith.addi %9, %c1_i32_3 : i32
      %11 = arith.index_cast %10 : i32 to index
      %12 = memref.load %arg1[%11] : memref<18xi32, #tpu.memory_space<smem>>
      %c3_i32_4 = arith.constant 3 : i32
      %13 = arith.muli %c3_i32_4, %arg4 : i32
      %c2_i32 = arith.constant 2 : i32
      %14 = arith.addi %13, %c2_i32 : i32
      %15 = arith.index_cast %14 : i32 to index
      %16 = memref.load %arg1[%15] : memref<18xi32, #tpu.memory_space<smem>>
      %17 = arith.index_cast %8 : i32 to index
      %c0_5 = arith.constant 0 : index
      %c0_6 = arith.constant 0 : index
      %18 = vector.load %arg2[%17, %c0_5, %c0_6] : memref<4x8x8xf32, #tpu.memory_space<vmem>>, vector<1x8x8xf32>
      %19 = vector.shape_cast %18 : vector<1x8x8xf32> to vector<8x8xf32>
      %20 = vector.broadcast %16 : i32 to vector<8x128xi32>
      %21 = arith.cmpi eq, %4, %20 : vector<8x128xi32>
      %22 = arith.extui %21 : vector<8x128xi1> to vector<8x128xi32>
      %23 = arith.sitofp %22 : vector<8x128xi32> to vector<8x128xf32>
      %cst_7 = arith.constant dense<0.000000e+00> : vector<8x128xf32>
      %24 = tpu.matmul %19, %23, %cst_7 {dimension_numbers = #tpu.dot_dimension_numbers<[1], [0], [0], [1], [0, 0, 1, 1], [], []>} : vector<8x8xf32>, vector<8x128xf32>, vector<8x128xf32> -> vector<8x128xf32>
      %c0_i32_8 = arith.constant 0 : i32
      %c32_i32 = arith.constant 32 : i32
      %25 = arith.maxsi %c0_i32_8, %12 : i32
      %26 = arith.minsi %c32_i32, %25 : i32
      %27 = arith.index_cast %26 : i32 to index
      %c0_9 = arith.constant 0 : index
      %28 = vector.load %arg3[%27, %c0_9] : memref<40x128xf32, #tpu.memory_space<vmem>>, vector<8x128xf32>
      %29 = arith.addf %28, %24 : vector<8x128xf32>
      %30 = arith.index_cast %26 : i32 to index
      %c0_10 = arith.constant 0 : index
      %31 = vector.load %arg3[%30, %c0_10] : memref<40x128xf32, #tpu.memory_space<vmem>>, vector<8x128xf32>
      tpu.vector_store %arg3[%30, %c0_10], %29 {strides = array<i32>} : memref<40x128xf32, #tpu.memory_space<vmem>>, vector<8x128xf32>,
    }
    %c6_i32_1 = arith.constant 6 : i32
    return
  }
  func.func @transform_0(%arg0: i32, %arg1: memref<18xi32, #tpu.memory_space<smem>>) -> (i32, i32, i32) {
    %c0_i32 = arith.constant 0 : i32
    %c0_i32_0 = arith.constant 0 : i32
    %c0_i32_1 = arith.constant 0 : i32
    %c0_i32_2 = arith.constant 0 : i32
    return %c0_i32, %c0_i32_0, %c0_i32_1 : i32, i32, i32
  }
  func.func @transform_1(%arg0: i32, %arg1: memref<18xi32, #tpu.memory_space<smem>>) -> (i32, i32) {
    %c0_i32 = arith.constant 0 : i32
    %c0_i32_0 = arith.constant 0 : i32
    %c0_i32_1 = arith.constant 0 : i32
    return %c0_i32, %c0_i32_0 : i32, i32
  }
}

</mosaic_0001>

<llo_original>
// kernel: tpu_custom_call.1
$region0: #{tpu_custom_call.1}
  #allocation0 [shape = 'u32[]', space=smem, size = 0x4, offset = 0x4, fixed_abs, tag = 'smem constant byte address 0x4 - core index']
  #allocation1 [shape = 'u32[144,128]{1,0:T(1,128)}', space=vmem, size = 0x12000, scoped, tag = 'internal scratch']
  #allocation2 [shape = 's32[1]{0}', space=sflag, size = 0x4, scoped, tag = 'scoped memory for tpu_custom_call.1']
  #allocation3 [shape = 'u8[512]{0}', space=smem, size = 0x200, scoped, tag = 'prefetched SMEM operand 0']
  %s0 = inlined_call_operand.hbm [shape: s32[18], index: 0, kind: input, shape index: {}]
  %s1 = inlined_call_operand.hbm [shape: f32[4,8,8], index: 1, kind: input, shape index: {}]
  %s2 = inlined_call_operand.hbm [shape: f32[40,128], index: 2, kind: output, shape index: {}]
  %s3 = sld [smem:[#allocation0]]
  $region25: #{tpu_custom_call.1} parent=0
    _
  %s5 = ssub.s32 1, %s3
  %s6 = scalar_select 0, %s5, %s3
  %8 = dma.hbm_to_smem %s0, 16, [#allocation3], [#allocation2]
  %9 = dma.done [#allocation2], 16
  %10 = sfence
  $region1: #{tpu_custom_call.1} parent=0
    #allocation4 [shape = 'u8[16384]{0}', space=vmem, size = 0x4000, scoped, tag = 'input window, operand 1, single buffered']
    #allocation5 [shape = 's32[1]{0}', space=sflag, size = 0x4, scoped, tag = 'scoped memory for tpu_custom_call.1']
    #allocation6 [shape = 's32[1]{0}', space=sflag, size = 0x4, scoped, tag = 'scoped memory for tpu_custom_call.1']
    #allocation7 [shape = 'u8[20480]{0}', space=vmem, size = 0x5000, scoped, tag = 'output window, operand 0, single buffered']
    %11 = vsyncpa [#allocation5], 0
    %12 = vsyncpa [#allocation6], 0
    // Predicated region
    $region2: #{tpu_custom_call.1} parent=1 // pred_check
      _
    $region3: #{tpu_custom_call.1} parent=1 // pred_check_branch
      %14 = sbr.rel (0) target = $region5
    $region4: #{tpu_custom_call.1} parent=1 // pred_region
      %s16 = ssub.s32 512, 512
      %17 = vsyncadd [#allocation5], %s16
      %s18 = sshll.u32 [#allocation4], 4
      %s19 = int_to_ptr.vmem [resolvable:$true] %s18
      %24 = dma.hbm_to_vmem [thread:$0]  %s1, 512, %s19, [#allocation5], 128, 128, 8
    $region5: #{tpu_custom_call.1} parent=1 // pred_fallthru
      _
    // Predicated region
    $region6: #{tpu_custom_call.1} parent=1 // pred_check
      _
    $region7: #{tpu_custom_call.1} parent=1 // pred_check_branch
      %26 = sbr.rel (0) target = $region9
    $region8: #{tpu_custom_call.1} parent=1 // pred_region
      %27 = dma.done [#allocation5], 512
    $region9: #{tpu_custom_call.1} parent=1 // pred_fallthru
      _
    %28 = vst [vmem:[#allocation7] sm:$0xff] 0.0
    %29 = vst [vmem:[#allocation7 + $0x8] sm:$0xff] 0.0
    %30 = vst [vmem:[#allocation7 + $0x10] sm:$0xff] 0.0
    %31 = vst [vmem:[#allocation7 + $0x18] sm:$0xff] 0.0
    %32 = vst [vmem:[#allocation7 + $0x20] sm:$0xff] 0.0
    %v33 = vlaneseq
    %v34 = vshrl.u32 %v33, 7
    %v35 = vlaneseq
    %v36 = vand.u32 %v35, 127
    %v37 = vsub.s32 %v36, %v34
    loop: start=0, step=1, limit=6
    $region10: #{tpu_custom_call.1} parent=1 // loop_pre_header
      _
    $region11: #{tpu_custom_call.1} parent=1 // loop_header
      %s39 = sphi 0, %s43
      %p40 = scmp.ge.s32.totalorder %s39, 6
    $region12: #{tpu_custom_call.1} parent=1 // loop_header_branch
      %42 = sbr.rel (%p40) target = $region16
    $region13: #{tpu_custom_call.1} parent=1 // loop_body
      %s44 = smul.u32 %s39, 3
      %s45 = sld [smem:[#allocation3 + %s44]]
      %s46 = sadd.s32 %s44, 1
      %s47 = sld [smem:[#allocation3 + %s46]]
      %s48 = sadd.s32 %s44, 2
      %s49 = sld [smem:[#allocation3 + %s48]]
      %s50 = smul.u32 %s45, 8
      %s51 = scalar_lea.vmem [#allocation4], %s50
      %v52 = vld [vmem:[%s51] sm:$0xff]
      %v53 = vstv %s49
      %vm54 = vcmp.eq.s32.totalorder %v37, %v53
      %v55 = vsel %vm54, 1, 0
      %v56 = vcvt.s32.f32 %v55
      %vm57 = vcmask 64512
      %v59 = vsel %vm57, %v52, 0
      %61 = vmatprep.subr.mxu0 0.0
      %62 = vmatpush1.msra.mxu0 %v56
      %63 = vmatprep.subr.mxu0 0.0
      %64 = vmatpush1.msra.mxu0 0.0
      %65 = vmatprep.subr.mxu0 0.0
      %66 = vmatpush1.msra.mxu0 0.0
      %67 = vmatprep.subr.mxu0 0.0
      %68 = vmatpush1.msra.mxu0 0.0
      %69 = vmatprep.subr.mxu0 0.0
      %70 = vmatpush1.msra.mxu0 0.0
      %71 = vmatprep.subr.mxu0 0.0
      %72 = vmatpush1.msra.mxu0 0.0
      %73 = vmatprep.subr.mxu0 0.0
      %74 = vmatpush1.msra.mxu0 0.0
      %75 = vmatprep.subr.mxu0 0.0
      %76 = vmatpush1.msra.mxu0 0.0
      %77 = vmatprep.subr.mxu0 0.0
      %78 = vmatpush1.msra.mxu0 0.0
      %79 = vmatprep.subr.mxu0 0.0
      %80 = vmatpush1.msra.mxu0 0.0
      %81 = vmatprep.subr.mxu0 0.0
      %82 = vmatpush1.msra.mxu0 0.0
      %83 = vmatprep.subr.mxu0 0.0
      %84 = vmatpush1.msra.mxu0 0.0
      %85 = vmatprep.subr.mxu0 0.0
      %86 = vmatpush1.msra.mxu0 0.0
      %87 = vmatprep.subr.mxu0 0.0
      %88 = vmatpush1.msra.mxu0 0.0
      %89 = vmatprep.subr.mxu0 0.0
      %90 = vmatpush1.msra.mxu0 0.0
      %91 = vmatprep.subr.mxu0 0.0
      %92 = vmatpush1.msra.mxu0 0.0
      %93 = vmatprep.subr.mxu0 0.0
      %94 = vmatpush1.msra.mxu0 0.0
      %95 = vmatprep.subr.mxu0 0.0
      %96 = vmatpush1.msra.mxu0 0.0
      %97 = vmatprep.subr.mxu0 0.0
      %98 = vmatpush1.msra.mxu0 0.0
      %99 = vmatprep.subr.mxu0 0.0
      %100 = vmatpush1.msra.mxu0 0.0
      %101 = vmatprep.subr.mxu0 0.0
      %102 = vmatpush1.msra.mxu0 0.0
      %103 = vmatprep.subr.mxu0 0.0
      %104 = vmatpush1.msra.mxu0 0.0
      %105 = vmatprep.subr.mxu0 0.0
      %106 = vmatpush1.msra.mxu0 0.0
      %107 = vmatprep.subr.mxu0 0.0
      %108 = vmatpush1.msra.mxu0 0.0
      %109 = vmatprep.subr.mxu0 0.0
      %110 = vmatpush1.msra.mxu0 0.0
      %111 = vmatprep.subr.mxu0 0.0
      %112 = vmatpush1.msra.mxu0 0.0
      %113 = vmatprep.subr.mxu0 0.0
      %114 = vmatpush1.msra.mxu0 0.0
      %115 = vmatprep.subr.mxu0 0.0
      %116 = vmatpush1.msra.mxu0 0.0
      %117 = vmatprep.subr.mxu0 0.0
      %118 = vmatpush1.msra.mxu0 0.0
      %119 = vmatprep.subr.mxu0 0.0
      %120 = vmatpush1.msra.mxu0 0.0
      %121 = vmatprep.subr.mxu0 0.0
      %122 = vmatpush1.msra.mxu0 0.0
      %123 = vmatprep.subr.mxu0 0.0
      %124 = vmatpush1.msra.mxu0 0.0
      %125 = vmatprep.mubr.f32.mxu0 0.0
      %126 = vmatmul.mubr.f32.gmra.mrb[0].mxu0 %v59
      %v127 = vpop.f32.mrb[0].mxu0
      %v128 = vadd.f32 0.0, %v127
      %v129 = vpop.f32.mrb[0].mxu0
      %130 = vdwg.mxu0
      %p131 = scmp.gt.s32.totalorder %s47, 0
      %s132 = scalar_select %p131, %s47, 0
      %p133 = scmp.lt.s32.totalorder %s132, 32
      %s134 = scalar_select %p133, %s132, 32
      %s135 = scalar_lea.vmem [#allocation7], %s134
      %v136 = vld [vmem:[%s135] sm:$0xff]
      %v137 = vadd.f32 %v136, %v128
      %138 = vst [vmem:[%s135] sm:$0xff] %v137
    $region14: #{tpu_custom_call.1} parent=1 // loop_footer
      %s43 = sadd.s32 1, %s39
    $region15: #{tpu_custom_call.1} parent=1 // loop_footer_branch
      %38 = sbr.rel target = $region11
    $region16: #{tpu_custom_call.1} parent=1 // loop_exit
      _
    // Predicated region
    $region17: #{tpu_custom_call.1} parent=1 // pred_check
      _
    $region18: #{tpu_custom_call.1} parent=1 // pred_check_branch
      %140 = sbr.rel (0) target = $region20
    $region19: #{tpu_custom_call.1} parent=1 // pred_region
      %s142 = ssub.s32 640, 640
      %143 = vsyncadd [#allocation6], %s142
      %s144 = sshll.u32 [#allocation7], 4
      %s145 = int_to_ptr.vmem [resolvable:$true] %s144
      %150 = dma.vmem_to_hbm [thread:$0]  %s145, 640, %s2, [#allocation6], 128, 128, 8
    $region20: #{tpu_custom_call.1} parent=1 // pred_fallthru
      _
    // Predicated region
    $region21: #{tpu_custom_call.1} parent=1 // pred_check
      _
    $region22: #{tpu_custom_call.1} parent=1 // pred_check_branch
      %152 = sbr.rel (0) target = $region24
    $region23: #{tpu_custom_call.1} parent=1 // pred_region
      %153 = dma.done [#allocation6], 640
    $region24: #{tpu_custom_call.1} parent=1 // pred_fallthru
      _
    %154 = vsyncpa [#allocation5], 1
    %155 = vsyncpa [#allocation6], 1

</llo_original>
